<compile_context>
chip_gen: v5e
topology: v5e:2x2
jax: 0.10.0
libtpu: 0.0.40
codegen_flags: <defaults>
</compile_context>

<pallas_src>
import functools

import jax
import jax.numpy as jnp
from jax.experimental import pallas as pl
from jax.experimental.pallas import tpu as pltpu

LANES = 128
_SENTINEL = 3e18   # padded coordinate value; (q - sentinel)^2 * |scale| underflows exp to 0


# --------------------------------------------------------------------------------------
# Pass 1: per-(point-tile, query) partial sums of the unnormalized RBF.
# --------------------------------------------------------------------------------------
def _gaussian_sum_kernel(qx_ref, qy_ref, xx_ref, xy_ref, psum_ref, *,
                         m_queries, neg_inv_2theta2):
    """Grid point (j,): one point tile, all M queries.

    qx_ref/qy_ref : (M,) f32 in SMEM (scalar-prefetched query coordinates)
    xx_ref/xy_ref : (block_rows, 128) f32 coordinate-plane tiles (VMEM)
    psum_ref      : (1, 1, M) f32 partial sums for this tile (VMEM)
    """
    sums = []
    for m in range(m_queries):            # M is small & static -> unrolled
        dx = xx_ref[...] - qx_ref[m]       # scalar broadcast against dense tile (VPU)
        dy = xy_ref[...] - qy_ref[m]
        rbf = jnp.exp((dx * dx + dy * dy) * neg_inv_2theta2)   # EUP; padded lanes -> 0
        sums.append(jnp.sum(rbf))          # XLU full-tile reduce
    psum_ref[...] = jnp.stack(sums).reshape(1, 1, m_queries)


# --------------------------------------------------------------------------------------
# Pass 2: recompute exp and write the *normalized* weights directly (no extra round trip).
# --------------------------------------------------------------------------------------
def _gaussian_norm_kernel(qx_ref, qy_ref, inv_ref, xx_ref, xy_ref, o_ref, *,
                          neg_inv_2theta2):
    """Grid point (j, m): point tile j, query m (tile axis OUTER -> inputs not re-DMAed).

    inv_ref : (M,) f32 in SMEM — per-query 1/sum from pass 1.
    o_ref   : (1, block_rows, 128) f32 normalized weights tile.
    """
    m = pl.program_id(1)
    dx = xx_ref[...] - qx_ref[m]
    dy = xy_ref[...] - qy_ref[m]
    rbf = jnp.exp((dx * dx + dy * dy) * neg_inv_2theta2)
    o_ref[0] = rbf * inv_ref[m]


# --------------------------------------------------------------------------------------
# Host-side wrappers
# --------------------------------------------------------------------------------------
def gaussian_prepare(X):
    """One-time preprocessing: split X (N, 2) into lane/sublane-dense coordinate planes
    of shape (nr, 128), sentinel-padded to whole (8, 128) vregs. Reuse across queries."""
    X = jnp.asarray(X, jnp.float32)
    n = int(X.shape[0])
    tile = 8 * LANES
    n_pad = pl.cdiv(max(n, 1), tile) * tile
    pad = n_pad - n
    xx = jnp.pad(X[:, 0], (0, pad), constant_values=_SENTINEL).reshape(-1, LANES)
    xy = jnp.pad(X[:, 1], (0, pad), constant_values=_SENTINEL).reshape(-1, LANES)
    return xx, xy, n


def gaussian_pallas_batched(queries, xx, xy, n_points, theta, *, block_rows=1024):
    """queries: (M, 2); xx/xy: prepared (nr, 128) planes -> (M, n_points) normalized weights."""
    theta = float(theta)
    if theta == 0.0:
        raise ValueError("theta must be nonzero")
    neg_inv_2theta2 = -1.0 / (2.0 * theta * theta)
    # Sentinel padding must underflow exp() to exactly 0 (needs dis * |scale| >~ 104).
    if 2.0 * _SENTINEL * _SENTINEL * abs(neg_inv_2theta2) < 104.0:
        raise ValueError("theta too large for sentinel-padded layout; use the JAX path")

    queries = jnp.asarray(queries, jnp.float32)
    m_queries = int(queries.shape[0])
    qx = queries[:, 0]
    qy = queries[:, 1]

    assert xx.shape == xy.shape and xx.shape[1] == LANES
    nr = int(xx.shape[0])

    # Effective tile rows: multiple of 8, <= requested, <= nr. Re-pad (with sentinel,
    # which contributes exactly 0) so nr divides evenly — no silently dropped tiles.
    br = max(8, min(int(block_rows), nr))
    br -= br % 8
    nr_pad = pl.cdiv(nr, br) * br
    if nr_pad != nr:
        pad = ((0, nr_pad - nr), (0, 0))
        xx = jnp.pad(xx, pad, constant_values=_SENTINEL)
        xy = jnp.pad(xy, pad, constant_values=_SENTINEL)
        nr = nr_pad
    num_tiles = nr // br

    # ---- Pass 1: tiny (num_tiles, 1, M) partial sums -----------------------------------
    psum = pl.pallas_call(
        functools.partial(_gaussian_sum_kernel,
                          m_queries=m_queries, neg_inv_2theta2=neg_inv_2theta2),
        out_shape=jax.ShapeDtypeStruct((num_tiles, 1, m_queries), jnp.float32),
        grid_spec=pltpu.PrefetchScalarGridSpec(
            num_scalar_prefetch=2,                      # qx, qy -> SMEM
            grid=(num_tiles,),
            in_specs=[
                pl.BlockSpec((br, LANES), lambda j, qx, qy: (j, 0)),
                pl.BlockSpec((br, LANES), lambda j, qx, qy: (j, 0)),
            ],
            out_specs=pl.BlockSpec((1, 1, m_queries), lambda j, qx, qy: (j, 0, 0)),
        ),
        compiler_params=pltpu.CompilerParams(dimension_semantics=("parallel",)),
    )(qx, qy, xx, xy)

    # Tiny reduction + reciprocal in plain JAX (M floats). denom==0 -> NaN, matching torch.
    denom = jnp.sum(psum.reshape(num_tiles, m_queries), axis=0)      # (M,)
    inv_denom = 1.0 / denom

    # ---- Pass 2: normalized output written directly -------------------------------------
    rbf = pl.pallas_call(
        functools.partial(_gaussian_norm_kernel, neg_inv_2theta2=neg_inv_2theta2),
        out_shape=jax.ShapeDtypeStruct((m_queries, nr, LANES), jnp.float32),
        grid_spec=pltpu.PrefetchScalarGridSpec(
            num_scalar_prefetch=3,                      # qx, qy, 1/denom -> SMEM
            grid=(num_tiles, m_queries),                # tile axis OUTER: inputs reused
            in_specs=[
                pl.BlockSpec((br, LANES), lambda j, m, qx, qy, inv: (j, 0)),
                pl.BlockSpec((br, LANES), lambda j, m, qx, qy, inv: (j, 0)),
            ],
            out_specs=pl.BlockSpec((1, br, LANES),
                                   lambda j, m, qx, qy, inv: (m, j, 0)),
        ),
        compiler_params=pltpu.CompilerParams(
            dimension_semantics=("parallel", "parallel")),
    )(qx, qy, inv_denom, xx, xy)

    # Trivial row-major reshape + slice back to the reference output shape.
    return rbf.reshape(m_queries, nr * LANES)[:, :n_points]


def gaussian_pallas(x, X, theta, *, block_rows=1024):
    """Module-faithful forward (forced Pallas path): x (2,), X (N, 2) -> (N,) weights."""
    xx, xy, n = gaussian_prepare(X)
    q = jnp.asarray(x, jnp.float32).reshape(1, 2)
    return gaussian_pallas_batched(q, xx, xy, n, theta, block_rows=block_rows)[0]


def gaussian_ref(x, X, theta):
    dis = jnp.sum((x[None, :] - X) ** 2, axis=1)
    rbf = jnp.exp(-dis / 2.0 / (theta ** 2))
    return rbf / jnp.sum(rbf)


def gaussian(x, X, theta, *, min_points_for_pallas=4096, block_rows=1024):
    """Routed entry: plain JAX for tiny N (kernel-launch overhead dominates),
    Pallas kernels otherwise."""
    X = jnp.asarray(X, jnp.float32)
    if X.shape[0] < min_points_for_pallas:
        return gaussian_ref(jnp.asarray(x, jnp.float32), X, float(theta))
    return gaussian_pallas(x, X, theta, block_rows=block_rows)


if __name__ == "__main__":
    theta = 0.5  # deterministic "parameter" from __init__

    key = jax.random.PRNGKey(0)
    k1, k2, k3, k4 = jax.random.split(key, 4)

    # Case 1: exact module-forward semantics (single query, N=8), forced Pallas path.
    x = jax.random.normal(k1, (2,), dtype=jnp.float32)
    X = jax.random.normal(k2, (8, 2), dtype=jnp.float32)
    out = gaussian_pallas(x, X, theta)
    jax.block_until_ready(out)
    ref = gaussian_ref(x, X, theta)
    assert out.shape == (8,)
    assert jnp.allclose(out, ref, atol=1e-5, rtol=1e-5)
    assert jnp.allclose(jnp.sum(out), 1.0, atol=1e-5)

    # Case 2: batched queries over a multi-tile point set. block_rows=8 is forced only
    # to exercise num_tiles > 1 (grid, partial-sum reduction, input reuse) at demo sizes;
    # the production default stays block_rows=1024.
    Q = jax.random.normal(k3, (3, 2), dtype=jnp.float32)
    X2 = jax.random.normal(k4, (2500, 2), dtype=jnp.float32)
    xx, xy, n = gaussian_prepare(X2)                      # prepared once, reused
    out2 = gaussian_pallas_batched(Q, xx, xy, n, theta, block_rows=8)
    jax.block_until_ready(out2)
    ref2 = jnp.stack([gaussian_ref(Q[i], X2, theta) for i in range(Q.shape[0])])
    assert out2.shape == (3, 2500)
    assert jnp.allclose(out2, ref2, atol=1e-5, rtol=1e-5)
    assert jnp.allclose(jnp.sum(out2, axis=1), jnp.ones(3), atol=1e-5)

    # Case 3: routed entry short-circuits tiny problems to the plain-JAX path.
    out3 = gaussian(x, X, theta)
    jax.block_until_ready(out3)
    assert jnp.allclose(out3, ref, atol=1e-5, rtol=1e-5)

    print("KERNEL_OK")
</pallas_src>

<mosaic_0001>
module attributes {stable_mosaic.version = 11 : i64} {
  func.func @_gaussian_sum_kernel(%arg0: i32, %arg1: memref<1xf32, #tpu.memory_space<smem>>, %arg2: memref<1xf32, #tpu.memory_space<smem>>, %arg3: memref<8x128xf32, #tpu.memory_space<vmem>>, %arg4: memref<8x128xf32, #tpu.memory_space<vmem>>, %arg5: memref<1x1x1xf32, #tpu.memory_space<vmem>>) attributes {dimension_semantics = [#tpu.dimension_semantics<parallel>], iteration_bounds = array<i64: 1>, scalar_prefetch = 2 : i64, scratch_operands = 0 : i64, tpu.core_type = #tpu.core_type<tc>, window_params = [{transform_indices = @transform_0, window_bounds = array<i64: 8, 128>}, {transform_indices = @transform_1, window_bounds = array<i64: 8, 128>}, {transform_indices = @transform_2, window_bounds = array<i64: 1, 1, 1>}]} {
    %c0 = arith.constant 0 : index
    %c0_0 = arith.constant 0 : index
    %0 = vector.load %arg3[%c0, %c0_0] : memref<8x128xf32, #tpu.memory_space<vmem>>, vector<8x128xf32>
    %c0_1 = arith.constant 0 : index
    %1 = memref.load %arg1[%c0_1] : memref<1xf32, #tpu.memory_space<smem>>
    %2 = vector.broadcast %1 : f32 to vector<8x128xf32>
    %3 = arith.subf %0, %2 : vector<8x128xf32>
    %c0_2 = arith.constant 0 : index
    %c0_3 = arith.constant 0 : index
    %4 = vector.load %arg4[%c0_2, %c0_3] : memref<8x128xf32, #tpu.memory_space<vmem>>, vector<8x128xf32>
    %c0_4 = arith.constant 0 : index
    %5 = memref.load %arg2[%c0_4] : memref<1xf32, #tpu.memory_space<smem>>
    %6 = vector.broadcast %5 : f32 to vector<8x128xf32>
    %7 = arith.subf %4, %6 : vector<8x128xf32>
    %8 = arith.mulf %3, %3 : vector<8x128xf32>
    %9 = arith.mulf %7, %7 : vector<8x128xf32>
    %10 = arith.addf %8, %9 : vector<8x128xf32>
    %cst = arith.constant -2.000000e+00 : f32
    %11 = vector.broadcast %cst : f32 to vector<8x128xf32>
    %12 = arith.mulf %10, %11 : vector<8x128xf32>
    %13 = math.exp %12 : vector<8x128xf32>
    %14 = vector.shape_cast %13 : vector<8x128xf32> to vector<1x8x128xf32>
    %cst_5 = arith.constant dense<0.000000e+00> : vector<1xf32>
    %15 = vector.multi_reduction <add>, %14, %cst_5 [1, 2] : vector<1x8x128xf32> to vector<1xf32>
    %16 = vector.shape_cast %15 : vector<1xf32> to vector<1x1x1xf32>
    %17 = vector.extract %16[0, 0, 0] : f32 from vector<1x1x1xf32>
    %18 = vector.broadcast %17 : f32 to vector<1xf32>
    %19 = vector.shape_cast %18 : vector<1xf32> to vector<1x1x1xf32>
    %c0_6 = arith.constant 0 : index
    %c0_7 = arith.constant 0 : index
    %c0_8 = arith.constant 0 : index
    %20 = vector.load %arg5[%c0_6, %c0_7, %c0_8] : memref<1x1x1xf32, #tpu.memory_space<vmem>>, vector<1x1x1xf32>
    tpu.vector_store %arg5[%c0_6, %c0_7, %c0_8], %19 {strides = array<i32>} : memref<1x1x1xf32, #tpu.memory_space<vmem>>, vector<1x1x1xf32>,
    return
  }
  func.func @transform_0(%arg0: i32, %arg1: memref<1xf32, #tpu.memory_space<smem>>, %arg2: memref<1xf32, #tpu.memory_space<smem>>) -> (i32, i32) {
    %c0_i32 = arith.constant 0 : i32
    %c0_i32_0 = arith.constant 0 : i32
    return %arg0, %c0_i32 : i32, i32
  }
  func.func @transform_1(%arg0: i32, %arg1: memref<1xf32, #tpu.memory_space<smem>>, %arg2: memref<1xf32, #tpu.memory_space<smem>>) -> (i32, i32) {
    %c0_i32 = arith.constant 0 : i32
    %c0_i32_0 = arith.constant 0 : i32
    return %arg0, %c0_i32 : i32, i32
  }
  func.func @transform_2(%arg0: i32, %arg1: memref<1xf32, #tpu.memory_space<smem>>, %arg2: memref<1xf32, #tpu.memory_space<smem>>) -> (i32, i32, i32) {
    %c0_i32 = arith.constant 0 : i32
    %c0_i32_0 = arith.constant 0 : i32
    %c0_i32_1 = arith.constant 0 : i32
    return %arg0, %c0_i32, %c0_i32_0 : i32, i32, i32
  }
}

</mosaic_0001>

<llo_original>
// kernel: tpu_custom_call.1
$region0: #{tpu_custom_call.1}
  #allocation0 [shape = 'u32[]', space=smem, size = 0x4, offset = 0x4, fixed_abs, tag = 'smem constant byte address 0x4 - core index']
  #allocation1 [shape = 'u32[72,128]{1,0:T(1,128)}', space=vmem, size = 0x9000, scoped, tag = 'internal scratch']
  #allocation2 [shape = 's32[1]{0}', space=sflag, size = 0x4, scoped, tag = 'scoped memory for tpu_custom_call.1']
  #allocation3 [shape = 'f32[1]{0:T(128)S(6)}', space=smem, size = 0x200, scoped, tag = 'prefetched SMEM operand 0']
  #allocation4 [shape = 'f32[1]{0:T(128)S(6)}', space=smem, size = 0x200, scoped, tag = 'prefetched SMEM operand 1']
  %s0 = inlined_call_operand.<no memory space> [shape: f32[1], index: 0, kind: input, shape index: {}]
  %s1 = inlined_call_operand.<no memory space> [shape: f32[1], index: 1, kind: input, shape index: {}]
  %s2 = inlined_call_operand.hbm [shape: f32[8,128], index: 2, kind: input, shape index: {}]
  %s3 = inlined_call_operand.hbm [shape: f32[8,128], index: 3, kind: input, shape index: {}]
  %s4 = inlined_call_operand.hbm [shape: f32[1,1,1], index: 4, kind: output, shape index: {}]
  %s5 = sld [smem:[#allocation0]]
  $region26: #{tpu_custom_call.1} parent=0
    _
  %s7 = ssub.s32 1, %s5
  %s8 = scalar_select 0, %s7, %s5
  %9 = sst [smem:[#allocation3]] %s0
  %10 = sst [smem:[#allocation4]] %s1
  $region1: #{tpu_custom_call.1} parent=0
    #allocation5 [shape = 'u8[4096]{0}', space=vmem, size = 0x1000, scoped, tag = 'input window, operand 2, single buffered']
    #allocation6 [shape = 's32[1]{0}', space=sflag, size = 0x4, scoped, tag = 'scoped memory for tpu_custom_call.1']
    #allocation7 [shape = 's32[1]{0}', space=sflag, size = 0x4, scoped, tag = 'scoped memory for tpu_custom_call.1']
    #allocation8 [shape = 'u8[4096]{0}', space=vmem, size = 0x1000, scoped, tag = 'input window, operand 3, single buffered']
    #allocation9 [shape = 's32[1]{0}', space=sflag, size = 0x4, scoped, tag = 'scoped memory for tpu_custom_call.1']
    #allocation10 [shape = 'u8[512]{0}', space=vmem, size = 0x400, scoped, tag = 'output window, operand 0, single buffered']
    %11 = vsyncpa [#allocation6], 0
    %12 = vsyncpa [#allocation9], 0
    %13 = vsyncpa [#allocation7], 0
    // Predicated region
    $region2: #{tpu_custom_call.1} parent=1 // pred_check
      _
    $region3: #{tpu_custom_call.1} parent=1 // pred_check_branch
      %15 = sbr.rel (0) target = $region5
    $region4: #{tpu_custom_call.1} parent=1 // pred_region
      %17 = vsyncadd [#allocation6], 0
      %s19 = sshll.u32 %s2, 4
      %s20 = int_to_ptr.hbm [resolvable:$true] %s19
      %s21 = sshll.u32 [#allocation5], 4
      %s22 = int_to_ptr.vmem [resolvable:$true] %s21
      %24 = dma.hbm_to_vmem [thread:$0]  %s20, 128, %s22, [#allocation6]
    $region5: #{tpu_custom_call.1} parent=1 // pred_fallthru
      _
    // Predicated region
    $region6: #{tpu_custom_call.1} parent=1 // pred_check
      _
    $region7: #{tpu_custom_call.1} parent=1 // pred_check_branch
      %26 = sbr.rel (0) target = $region9
    $region8: #{tpu_custom_call.1} parent=1 // pred_region
      %28 = vsyncadd [#allocation9], 0
      %s30 = sshll.u32 %s3, 4
      %s31 = int_to_ptr.hbm [resolvable:$true] %s30
      %s32 = sshll.u32 [#allocation8], 4
      %s33 = int_to_ptr.vmem [resolvable:$true] %s32
      %35 = dma.hbm_to_vmem [thread:$0]  %s31, 128, %s33, [#allocation9]
    $region9: #{tpu_custom_call.1} parent=1 // pred_fallthru
      _
    // Predicated region
    $region10: #{tpu_custom_call.1} parent=1 // pred_check
      _
    $region11: #{tpu_custom_call.1} parent=1 // pred_check_branch
      %37 = sbr.rel (0) target = $region13
    $region12: #{tpu_custom_call.1} parent=1 // pred_region
      %39 = dma.done [#allocation6], 128
    $region13: #{tpu_custom_call.1} parent=1 // pred_fallthru
      _
    // Predicated region
    $region14: #{tpu_custom_call.1} parent=1 // pred_check
      _
    $region15: #{tpu_custom_call.1} parent=1 // pred_check_branch
      %41 = sbr.rel (0) target = $region17
    $region16: #{tpu_custom_call.1} parent=1 // pred_region
      %43 = dma.done [#allocation9], 128
    $region17: #{tpu_custom_call.1} parent=1 // pred_fallthru
      _
    %v44 = vld [vmem:[#allocation5] sm:$0xff]
    %s45 = sld [smem:[#allocation3]]
    %v46 = vstv %s45
    %v47 = vsub.f32 %v44, %v46
    %v48 = vld [vmem:[#allocation8] sm:$0xff]
    %s49 = sld [smem:[#allocation4]]
    %v50 = vstv %s49
    %v51 = vsub.f32 %v48, %v50
    %v52 = vmul.f32 %v47, %v47
    %v53 = vmul.f32 %v51, %v51
    %v54 = vadd.f32 %v52, %v53
    %v55 = vmul.f32 %v54, -2.0
    %v56 = vmul.f32 %v55, 1.442695
    %v57 = vpow.pop %v56
    %58 = vadd.xlane.f32.xlu0 %v57
    %v59 = vpop.xlane.xlu0 %58
    %v60 = vrot.slane %v59, 4
    %v61 = vadd.f32 %v59, %v60
    %v62 = vrot.slane %v61, 2
    %v63 = vadd.f32 %v61, %v62
    %v64 = vrot.slane %v63, 1
    %v65 = vadd.f32 %v63, %v64
    %s66 = vtos %v65
    %v67 = vstv %s66
    %vm68 = vcmask 0
    %69 = vst.msk [vmem:[#allocation10] sm:$0x1] %vm68, %v67
    // Predicated region
    $region18: #{tpu_custom_call.1} parent=1 // pred_check
      _
    $region19: #{tpu_custom_call.1} parent=1 // pred_check_branch
      %71 = sbr.rel (0) target = $region21
    $region20: #{tpu_custom_call.1} parent=1 // pred_region
      %73 = vsyncadd [#allocation7], 0
      %s75 = sshll.u32 [#allocation10], 4
      %s76 = int_to_ptr.vmem [resolvable:$true] %s75
      %s77 = sshll.u32 %s4, 4
      %s78 = int_to_ptr.hbm [resolvable:$true] %s77
      %80 = dma.vmem_to_hbm [thread:$0]  %s76, 16, %s78, [#allocation7]
    $region21: #{tpu_custom_call.1} parent=1 // pred_fallthru
      _
    // Predicated region
    $region22: #{tpu_custom_call.1} parent=1 // pred_check
      _
    $region23: #{tpu_custom_call.1} parent=1 // pred_check_branch
      %82 = sbr.rel (0) target = $region25
    $region24: #{tpu_custom_call.1} parent=1 // pred_region
      %84 = dma.done [#allocation7], 16
    $region25: #{tpu_custom_call.1} parent=1 // pred_fallthru
      _
    %85 = vsyncpa [#allocation6], 1
    %86 = vsyncpa [#allocation9], 1
    %87 = vsyncpa [#allocation7], 1

</llo_original>
